<compile_context>
chip_gen: v6e
topology: v6e:2x2x1
jax: 0.10.0
libtpu: 0.0.40
codegen_flags: <defaults>
</compile_context>

<pallas_src>
import numpy as np
import jax
import jax.numpy as jnp
from jax.experimental import pallas as pl
from jax.experimental.pallas import tpu as pltpu

KSIZE = 5          # deterministic "synthetic_alpha_blur_kernel_range" choice
SIGMA = 1.0
PAD = KSIZE // 2
BOUNDARY_EPS = 1e-3
_LANE = 128


def _gaussian_1d_np():
    ax = np.arange(KSIZE, dtype=np.float64) - PAD
    g = np.exp(-(ax ** 2) / (2.0 * SIGMA ** 2))
    return g / g.sum()


_G1 = _gaussian_1d_np()            # separable 1-D taps (baked as static floats)


def _boundary_mask(targets_f32):
    """Boundary weight map: separable 5x5 Gaussian blur (zero padded) of the
    binary target; boundary pixels are where the blur is strictly in (eps, 1-eps).

    Hoisted to the wrapper (tiny vs. the BCE over C logit channels); used by
    both the Pallas path and the pure-JAX reference so the mask bits are
    bit-identical (no eps-threshold parity flips)."""
    B, H, W = targets_f32.shape
    tp = jnp.pad(targets_f32, ((0, 0), (PAD, PAD), (PAD, PAD)))
    tmp = float(_G1[0]) * tp[:, :, 0:W]                   # seed with first tap
    for kx in range(1, KSIZE):
        tmp = tmp + float(_G1[kx]) * tp[:, :, kx:kx + W]
    blurred = float(_G1[0]) * tmp[:, 0:H, :]
    for ky in range(1, KSIZE):
        blurred = blurred + float(_G1[ky]) * tmp[:, ky:ky + H, :]
    return ((blurred > BOUNDARY_EPS)
            & (blurred < 1.0 - BOUNDARY_EPS)).astype(jnp.float32)


def _bce_kernel(flags_ref, x_ref, t_ref, m_ref, o_ref):
    """One (batch, spatial-tile) block per grid step.

    flags_ref : SMEM (B*nS,) int32  per-tile "has boundary pixels" flags (prefetched)
    x_ref     : (1, C, TILE_S)      logits tile (caller dtype: f32 or bf16)
    t_ref     : (1, 1, TILE_S)      target tile (bf16, {0,1})
    m_ref     : (1, 1, TILE_S)      boundary-mask tile (bf16, {0,1})
    o_ref     : (1, 1, 8, 128)      lane-dense per-tile partial sum (f32)
    """
    b = pl.program_id(0)
    s = pl.program_id(1)
    n_s = pl.num_programs(1)
    flag = flags_ref[b * n_s + s]

    @pl.when(flag == 0)
    def _():
        # No boundary pixels in this tile: skip the EUP-heavy softplus entirely.
        o_ref[...] = jnp.zeros_like(o_ref)

    @pl.when(flag != 0)
    def _():
        x = x_ref[0].astype(jnp.float32)                  # (C, TILE_S), f32 math
        t = t_ref[0].astype(jnp.float32)                  # (1, TILE_S)
        m = m_ref[0].astype(jnp.float32)                  # (1, TILE_S)
        # Numerically stable BCE-with-logits.
        bce = jnp.maximum(x, 0.0) - x * t + jnp.log1p(jnp.exp(-jnp.abs(x)))
        bce_c = jnp.sum(bce, axis=0, keepdims=True)       # reduce C before mask mul
        partial = jnp.sum(bce_c * m)                      # scalar f32
        # lane-dense store (unmasked vst); wrapper reads [b, s, 0, 0]
        o_ref[0, 0] = partial * jnp.ones((8, _LANE), jnp.float32)


def _choose_tile_s(C, S, logit_itemsize, budget_bytes=8 * 1024 * 1024):
    """Largest lane-aligned spatial tile keeping per-step VMEM (double-buffered
    DMA blocks + f32 temporaries) under ~8 MiB: safe headroom on every
    generation, critically v7x's 64 MiB physical / 32 MiB scoped default."""
    per_elem = 2 * (C * logit_itemsize + 2 * 2) + 3 * C * 4
    tile = max(_LANE, (budget_bytes // per_elem) // _LANE * _LANE)
    s_ceil = -(-S // _LANE) * _LANE
    return min(tile, s_ceil)


def blur_boundary_loss(outputs, targets, tile_s=None):
    """outputs: (B, C, H, W) logits (f32 or bf16); targets: (B, H, W) {0,1} -> scalar."""
    B, C, H, W = outputs.shape
    S = H * W

    # ---- boundary weight map: tiny separable blur, hoisted to the wrapper ----
    mask = _boundary_mask(targets.astype(jnp.float32))            # (B, H, W), {0,1}

    # ---- lane-dense repack: flatten (H, W), pad to a multiple of TILE_S ------
    if tile_s is None:
        tile_s = _choose_tile_s(C, S, jnp.dtype(outputs.dtype).itemsize)
    n_s = -(-S // tile_s)
    s_pad = n_s * tile_s

    x = outputs.reshape(B, C, S)                                  # caller dtype (bf16 ok)
    t = targets.astype(jnp.bfloat16).reshape(B, 1, S)             # {0,1}: exact in bf16
    m = mask.astype(jnp.bfloat16).reshape(B, 1, S)
    if s_pad != S:
        x = jnp.pad(x, ((0, 0), (0, 0), (0, s_pad - S)))
        t = jnp.pad(t, ((0, 0), (0, 0), (0, s_pad - S)))
        m = jnp.pad(m, ((0, 0), (0, 0), (0, s_pad - S)))          # padded mask=0 -> no contribution

    # Per-(batch, tile) "has boundary pixels" flags, scalar-prefetched to SMEM.
    flags = (m.reshape(B, n_s, tile_s).max(axis=-1) > 0).astype(jnp.int32).reshape(B * n_s)

    partials = pl.pallas_call(
        _bce_kernel,
        out_shape=jax.ShapeDtypeStruct((B, n_s, 8, _LANE), jnp.float32),
        grid_spec=pltpu.PrefetchScalarGridSpec(
            num_scalar_prefetch=1,
            grid=(B, n_s),
            in_specs=[
                pl.BlockSpec((1, C, tile_s), lambda b, s, flags: (b, 0, s)),
                pl.BlockSpec((1, 1, tile_s), lambda b, s, flags: (b, 0, s)),
                pl.BlockSpec((1, 1, tile_s), lambda b, s, flags: (b, 0, s)),
            ],
            out_specs=pl.BlockSpec((1, 1, 8, _LANE),
                                   lambda b, s, flags: (b, s, 0, 0)),
        ),
        compiler_params=pltpu.CompilerParams(
            dimension_semantics=("parallel", "parallel")),
    )(flags, x, t, m)

    total = jnp.sum(partials[:, :, 0, 0])
    return total / jnp.float32(B * C * H * W)


def _reference_loss(outputs, targets):
    """Pure-JAX reference with identical semantics (for a correctness check)."""
    outputs = outputs.astype(jnp.float32)
    targets = targets.astype(jnp.float32)
    mask = _boundary_mask(targets)
    x = outputs
    t = targets[:, None, :, :]
    bce = jnp.maximum(x, 0.0) - x * t + jnp.log1p(jnp.exp(-jnp.abs(x)))
    return jnp.mean(bce * mask[:, None, :, :])


if __name__ == "__main__":
    B, C, H, W = 2, 4, 16, 16
    key = jax.random.PRNGKey(0)
    k_logits, k_mask = jax.random.split(key)

    outputs = jax.random.normal(k_logits, (B, C, H, W), dtype=jnp.float32)
    targets = (jax.random.uniform(k_mask, (B, H, W)) > 0.5).astype(jnp.float32)

    # f32 path, multi-tile grid (tile_s=128 -> 2 spatial tiles per batch).
    loss = jax.block_until_ready(blur_boundary_loss(outputs, targets, tile_s=128))
    ref = jax.block_until_ready(_reference_loss(outputs, targets))
    np.testing.assert_allclose(np.asarray(loss), np.asarray(ref), rtol=1e-5, atol=1e-6)

    # bf16 logit-transport path (cast to f32 inside the kernel).
    loss_bf16 = jax.block_until_ready(
        blur_boundary_loss(outputs.astype(jnp.bfloat16), targets, tile_s=128))
    ref_bf16 = jax.block_until_ready(
        _reference_loss(outputs.astype(jnp.bfloat16).astype(jnp.float32), targets))
    np.testing.assert_allclose(np.asarray(loss_bf16), np.asarray(ref_bf16),
                               rtol=1e-5, atol=1e-6)

    # Boundary-free target: exercises the flag-gated (softplus-skipped) path.
    zeros_t = jnp.zeros((B, H, W), jnp.float32)
    loss_zero = jax.block_until_ready(blur_boundary_loss(outputs, zeros_t))
    np.testing.assert_allclose(np.asarray(loss_zero), 0.0, atol=1e-7)

    print("KERNEL_OK")
</pallas_src>

<mosaic_0001>
module attributes {stable_mosaic.version = 11 : i64} {
  func.func @_bce_kernel(%arg0: i32, %arg1: i32, %arg2: memref<4xi32, #tpu.memory_space<smem>>, %arg3: memref<1x4x128xf32, #tpu.memory_space<vmem>>, %arg4: memref<1x1x128xbf16, #tpu.memory_space<vmem>>, %arg5: memref<1x1x128xbf16, #tpu.memory_space<vmem>>, %arg6: memref<1x1x8x128xf32, #tpu.memory_space<vmem>>) attributes {dimension_semantics = [#tpu.dimension_semantics<parallel>, #tpu.dimension_semantics<parallel>], iteration_bounds = array<i64: 2, 2>, scalar_prefetch = 1 : i64, scratch_operands = 0 : i64, tpu.core_type = #tpu.core_type<tc>, window_params = [{transform_indices = @transform_0, window_bounds = array<i64: 1, 4, 128>}, {transform_indices = @transform_1, window_bounds = array<i64: 1, 1, 128>}, {transform_indices = @transform_2, window_bounds = array<i64: 1, 1, 128>}, {transform_indices = @transform_3, window_bounds = array<i64: 1, 1, 8, 128>}]} {
    %c2_i32 = arith.constant 2 : i32
    %0 = arith.muli %arg0, %c2_i32 : i32
    %1 = arith.addi %0, %arg1 : i32
    %2 = arith.index_cast %1 : i32 to index
    %3 = memref.load %arg2[%2] : memref<4xi32, #tpu.memory_space<smem>>
    %c0_i32 = arith.constant 0 : i32
    %4 = arith.cmpi eq, %3, %c0_i32 : i32
    %5 = arith.extui %4 : i1 to i32
    %c0_i32_0 = arith.constant 0 : i32
    %6 = arith.cmpi ne, %5, %c0_i32_0 : i32
    scf.if %6 {
      %cst = arith.constant 0.000000e+00 : f32
      %10 = vector.broadcast %cst : f32 to vector<1x1x8x128xf32>
      %c0 = arith.constant 0 : index
      %c0_3 = arith.constant 0 : index
      %c0_4 = arith.constant 0 : index
      %c0_5 = arith.constant 0 : index
      %11 = vector.load %arg6[%c0, %c0_3, %c0_4, %c0_5] : memref<1x1x8x128xf32, #tpu.memory_space<vmem>>, vector<1x1x8x128xf32>
      tpu.vector_store %arg6[%c0, %c0_3, %c0_4, %c0_5], %10 {strides = array<i32>} : memref<1x1x8x128xf32, #tpu.memory_space<vmem>>, vector<1x1x8x128xf32>,
    } else {
    }
    %c0_i32_1 = arith.constant 0 : i32
    %7 = arith.cmpi ne, %3, %c0_i32_1 : i32
    %8 = arith.extui %7 : i1 to i32
    %c0_i32_2 = arith.constant 0 : i32
    %9 = arith.cmpi ne, %8, %c0_i32_2 : i32
    scf.if %9 {
      %c0 = arith.constant 0 : index
      %c0_3 = arith.constant 0 : index
      %c0_4 = arith.constant 0 : index
      %10 = vector.load %arg3[%c0, %c0_3, %c0_4] : memref<1x4x128xf32, #tpu.memory_space<vmem>>, vector<1x4x128xf32>
      %11 = vector.shape_cast %10 : vector<1x4x128xf32> to vector<4x128xf32>
      %c0_5 = arith.constant 0 : index
      %c0_6 = arith.constant 0 : index
      %c0_7 = arith.constant 0 : index
      %12 = vector.load %arg4[%c0_5, %c0_6, %c0_7] : memref<1x1x128xbf16, #tpu.memory_space<vmem>>, vector<1x1x128xbf16>
      %13 = vector.shape_cast %12 : vector<1x1x128xbf16> to vector<1x128xbf16>
      %14 = arith.extf %13 : vector<1x128xbf16> to vector<1x128xf32>
      %c0_8 = arith.constant 0 : index
      %c0_9 = arith.constant 0 : index
      %c0_10 = arith.constant 0 : index
      %15 = vector.load %arg5[%c0_8, %c0_9, %c0_10] : memref<1x1x128xbf16, #tpu.memory_space<vmem>>, vector<1x1x128xbf16>
      %16 = vector.shape_cast %15 : vector<1x1x128xbf16> to vector<1x128xbf16>
      %17 = arith.extf %16 : vector<1x128xbf16> to vector<1x128xf32>
      %cst = arith.constant 0.000000e+00 : f32
      %18 = vector.broadcast %cst : f32 to vector<4x128xf32>
      %19 = arith.maximumf %11, %18 : vector<4x128xf32>
      %20 = vector.broadcast %14 : vector<1x128xf32> to vector<4x128xf32>
      %21 = arith.mulf %11, %20 : vector<4x128xf32>
      %22 = arith.subf %19, %21 : vector<4x128xf32>
      %23 = math.absf %11 : vector<4x128xf32>
      %cst_11 = arith.constant 0.000000e+00 : f32
      %24 = vector.broadcast %cst_11 : f32 to vector<4x128xf32>
      %25 = arith.subf %24, %23 : vector<4x128xf32>
      %26 = math.exp %25 : vector<4x128xf32>
      %27 = math.log1p %26 : vector<4x128xf32>
      %28 = arith.addf %22, %27 : vector<4x128xf32>
      %cst_12 = arith.constant dense<0.000000e+00> : vector<128xf32>
      %29 = vector.multi_reduction <add>, %28, %cst_12 [0] : vector<4x128xf32> to vector<128xf32>
      %30 = vector.shape_cast %29 : vector<128xf32> to vector<1x128xf32>
      %31 = arith.mulf %30, %17 : vector<1x128xf32>
      %32 = vector.shape_cast %31 : vector<1x128xf32> to vector<1x1x128xf32>
      %cst_13 = arith.constant dense<0.000000e+00> : vector<1xf32>
      %33 = vector.multi_reduction <add>, %32, %cst_13 [1, 2] : vector<1x1x128xf32> to vector<1xf32>
      %34 = vector.shape_cast %33 : vector<1xf32> to vector<1x1x1xf32>
      %35 = vector.extract %34[0, 0, 0] : f32 from vector<1x1x1xf32>
      %cst_14 = arith.constant 1.000000e+00 : f32
      %36 = vector.broadcast %cst_14 : f32 to vector<8x128xf32>
      %37 = vector.broadcast %35 : f32 to vector<8x128xf32>
      %38 = arith.mulf %37, %36 : vector<8x128xf32>
      %c0_15 = arith.constant 0 : index
      %c0_16 = arith.constant 0 : index
      %c0_17 = arith.constant 0 : index
      %c0_18 = arith.constant 0 : index
      %39 = vector.load %arg6[%c0_15, %c0_16, %c0_17, %c0_18] : memref<1x1x8x128xf32, #tpu.memory_space<vmem>>, vector<1x1x8x128xf32>
      %40 = vector.shape_cast %39 : vector<1x1x8x128xf32> to vector<8x128xf32>
      %41 = vector.shape_cast %38 : vector<8x128xf32> to vector<1x1x8x128xf32>
      tpu.vector_store %arg6[%c0_15, %c0_16, %c0_17, %c0_18], %41 {strides = array<i32>} : memref<1x1x8x128xf32, #tpu.memory_space<vmem>>, vector<1x1x8x128xf32>,
    } else {
    }
    return
  }
  func.func @transform_0(%arg0: i32, %arg1: i32, %arg2: memref<4xi32, #tpu.memory_space<smem>>) -> (i32, i32, i32) {
    %c0_i32 = arith.constant 0 : i32
    %c0_i32_0 = arith.constant 0 : i32
    return %arg0, %c0_i32, %arg1 : i32, i32, i32
  }
  func.func @transform_1(%arg0: i32, %arg1: i32, %arg2: memref<4xi32, #tpu.memory_space<smem>>) -> (i32, i32, i32) {
    %c0_i32 = arith.constant 0 : i32
    %c0_i32_0 = arith.constant 0 : i32
    return %arg0, %c0_i32, %arg1 : i32, i32, i32
  }
  func.func @transform_2(%arg0: i32, %arg1: i32, %arg2: memref<4xi32, #tpu.memory_space<smem>>) -> (i32, i32, i32) {
    %c0_i32 = arith.constant 0 : i32
    %c0_i32_0 = arith.constant 0 : i32
    return %arg0, %c0_i32, %arg1 : i32, i32, i32
  }
  func.func @transform_3(%arg0: i32, %arg1: i32, %arg2: memref<4xi32, #tpu.memory_space<smem>>) -> (i32, i32, i32, i32) {
    %c0_i32 = arith.constant 0 : i32
    %c0_i32_0 = arith.constant 0 : i32
    %c0_i32_1 = arith.constant 0 : i32
    return %arg0, %arg1, %c0_i32, %c0_i32_0 : i32, i32, i32, i32
  }
}

</mosaic_0001>

<llo_original>
// kernel: tpu_custom_call.1
$region0: #{tpu_custom_call.1}
  #allocation0 [shape = 'u32[]', space=smem, size = 0x4, offset = 0x4, fixed_abs, tag = 'smem constant byte address 0x4 - core index']
  #allocation1 [shape = 'u32[144,128]{1,0:T(1,128)}', space=vmem, size = 0x12000, scoped, tag = 'internal scratch']
  #allocation2 [shape = 's32[1]{0}', space=sflag, size = 0x4, scoped, tag = 'scoped memory for tpu_custom_call.1']
  #allocation3 [shape = 'u8[512]{0}', space=smem, size = 0x200, scoped, tag = 'prefetched SMEM operand 0']
  %s0 = inlined_call_operand.vmem [shape: s32[4], index: 0, kind: input, shape index: {}]
  %s1 = inlined_call_operand.hbm [shape: f32[2,4,256], index: 1, kind: input, shape index: {}]
  %s2 = inlined_call_operand.vmem [shape: bf16[2,1,256], index: 2, kind: input, shape index: {}]
  %s3 = inlined_call_operand.vmem [shape: bf16[2,1,256], index: 3, kind: input, shape index: {}]
  %s4 = inlined_call_operand.hbm [shape: f32[2,2,8,128], index: 4, kind: output, shape index: {}]
  %s5 = sld [smem:[#allocation0]]
  $region57: #{tpu_custom_call.1} parent=0
    _
  %s7 = ssub.s32 1, %s5
  %s8 = scalar_select 0, %s7, %s5
  %s9 = sshll.u32 %s0, 4
  %s10 = int_to_ptr.vmem [resolvable:$true] %s9
  %12 = dma.vmem_to_smem %s10, 16, [#allocation3], [#allocation2]
  %13 = dma.done [#allocation2], 16
  %14 = sfence
  $region1: #{tpu_custom_call.1} parent=0
    #allocation4 [shape = 'u8[4096]{0}', space=vmem, size = 0x1000, scoped, tag = 'input window, operand 1']
    #allocation5 [shape = 's32[2]{0}', space=sflag, size = 0x8, scoped, tag = 'scoped memory for tpu_custom_call.1']
    #allocation6 [shape = 's32[2]{0}', space=sflag, size = 0x8, scoped, tag = 'scoped memory for tpu_custom_call.1']
    #allocation7 [shape = 'u8[8192]{0}', space=vmem, size = 0x2000, scoped, tag = 'output window, operand 0']
    %15 = vsyncpa [#allocation5], 0
    %s16 = scalar_lea.sflag [#allocation5], 1
    %17 = vsyncpa %s16, 0
    %18 = vsyncpa [#allocation6], 0
    %s19 = scalar_lea.sflag [#allocation6], 1
    %20 = vsyncpa %s19, 0
    loop: start=0, step=1, limit=6
    $region2: #{tpu_custom_call.1} parent=1 // loop_pre_header
      _
    $region3: #{tpu_custom_call.1} parent=1 // loop_header
      %s22 = sphi 0, %s26
      %p23 = scmp.ge.s32.totalorder %s22, 6
      %s29 = sphi 0, %s41
      %s30 = sphi 0, %s37
      %s31 = sphi 0, %s29
      %s32 = sphi 0, %s30
      %s33 = sphi 0, %s31
      %s34 = sphi 0, %s32
      %s46 = sphi 0, %s48
      %s49 = sphi 0, %s46
      %s50 = sphi 0, %s49
      %s66 = sphi 0, %s50
      %s74 = sphi 0, %s76
      %s77 = sphi 0, %s74
      %s78 = sphi 0, %s77
      %s94 = sphi 0, %s78
      %s102 = sphi 0, %s104
      %s105 = sphi 0, %s102
      %s106 = sphi 0, %s105
      %s122 = sphi 0, %s106
      %s130 = sphi 0, %s132
      %s133 = sphi 0, %s130
      %s134 = sphi 0, %s133
      %s150 = sphi 0, %s134
    $region4: #{tpu_custom_call.1} parent=1 // loop_header_branch
      %25 = sbr.rel (%p23) target = $region8
    $region5: #{tpu_custom_call.1} parent=1 // loop_body
      %s27 = ssub.s32 %s22, 1
      %s28 = ssub.s32 %s22, 2
      %s35 = sadd.s32 1, %s30
      %p36 = scmp.ge.s32.totalorder %s35, 2
      %s37 = scalar_select %p36, 0, %s35
      %s38 = sadd.s32 1, %s29
      %s39 = scalar_select %p36, %s38, %s29
      %p40 = scmp.ge.s32.totalorder %s39, 2
      %s41 = scalar_select %p40, 0, %s39
      %s42 = ssub.s32 %s29, %s41
      %s43 = ssub.s32 %s30, %s37
      %s44 = sor.u32 %s42, %s43
      %p45 = scmp.eq.s32.totalorder %s44, 0
      %s47 = sadd.s32 %s46, 1
      %s48 = scalar_select %p45, %s46, %s47
      %p51 = pneg %p45
      %p52 = scmp.eq.s32.totalorder %s22, 3
      %p53 = por %p51, %p52
      %p54 = scmp.ne.s32.totalorder %s46, %s49
      %p55 = scmp.eq.s32.totalorder %s22, 0
      %p56 = por %p54, %p55
      %p57 = scmp.ne.s32.totalorder %s46, %s49
      %p58 = scmp.eq.s32.totalorder %s27, 3
      %p59 = por %p57, %p58
      %p60 = scmp.ne.s32.totalorder %s49, %s50
      %p61 = scmp.eq.s32.totalorder %s27, 0
      %p62 = por %p60, %p61
      %p63 = scmp.ne.s32.totalorder %s49, %s50
      %p64 = scmp.eq.s32.totalorder %s28, 3
      %p65 = por %p63, %p64
      %p67 = scmp.ne.s32.totalorder %s50, %s66
      %p68 = scmp.eq.s32.totalorder %s28, 0
      %p69 = por %p67, %p68
      %s70 = ssub.s32 %s29, %s41
      %s71 = ssub.s32 %s30, %s37
      %s72 = sor.u32 %s70, %s71
      %p73 = scmp.eq.s32.totalorder %s72, 0
      %s75 = sadd.s32 %s74, 1
      %s76 = scalar_select %p73, %s74, %s75
      %p79 = pneg %p73
      %p80 = scmp.eq.s32.totalorder %s22, 3
      %p81 = por %p79, %p80
      %p82 = scmp.ne.s32.totalorder %s74, %s77
      %p83 = scmp.eq.s32.totalorder %s22, 0
      %p84 = por %p82, %p83
      %p85 = scmp.ne.s32.totalorder %s74, %s77
      %p86 = scmp.eq.s32.totalorder %s27, 3
      %p87 = por %p85, %p86
      %p88 = scmp.ne.s32.totalorder %s77, %s78
      %p89 = scmp.eq.s32.totalorder %s27, 0
      %p90 = por %p88, %p89
      %p91 = scmp.ne.s32.totalorder %s77, %s78
      %p92 = scmp.eq.s32.totalorder %s28, 3
      %p93 = por %p91, %p92
      %p95 = scmp.ne.s32.totalorder %s78, %s94
      %p96 = scmp.eq.s32.totalorder %s28, 0
      %p97 = por %p95, %p96
      %s98 = ssub.s32 %s29, %s41
      %s99 = ssub.s32 %s30, %s37
      %s100 = sor.u32 %s98, %s99
      %p101 = scmp.eq.s32.totalorder %s100, 0
      %s103 = sadd.s32 %s102, 1
      %s104 = scalar_select %p101, %s102, %s103
      %p107 = pneg %p101
      %p108 = scmp.eq.s32.totalorder %s22, 3
      %p109 = por %p107, %p108
      %p110 = scmp.ne.s32.totalorder %s102, %s105
      %p111 = scmp.eq.s32.totalorder %s22, 0
      %p112 = por %p110, %p111
      %p113 = scmp.ne.s32.totalorder %s102, %s105
      %p114 = scmp.eq.s32.totalorder %s27, 3
      %p115 = por %p113, %p114
      %p116 = scmp.ne.s32.totalorder %s105, %s106
      %p117 = scmp.eq.s32.totalorder %s27, 0
      %p118 = por %p116, %p117
      %p119 = scmp.ne.s32.totalorder %s105, %s106
      %p120 = scmp.eq.s32.totalorder %s28, 3
      %p121 = por %p119, %p120
      %p123 = scmp.ne.s32.totalorder %s106, %s122
      %p124 = scmp.eq.s32.totalorder %s28, 0
      %p125 = por %p123, %p124
      %s126 = ssub.s32 %s29, %s41
      %s127 = ssub.s32 %s30, %s37
      %s128 = sor.u32 %s126, %s127
      %p129 = scmp.eq.s32.totalorder %s128, 0
      %s131 = sadd.s32 %s130, 1
      %s132 = scalar_select %p129, %s130, %s131
      %p135 = pneg %p129
      %p136 = scmp.eq.s32.totalorder %s22, 3
      %p137 = por %p135, %p136
      %p138 = scmp.ne.s32.totalorder %s130, %s133
      %p139 = scmp.eq.s32.totalorder %s22, 0
      %p140 = por %p138, %p139
      %p141 = scmp.ne.s32.totalorder %s130, %s133
      %p142 = scmp.eq.s32.totalorder %s27, 3
      %p143 = por %p141, %p142
      %p144 = scmp.ne.s32.totalorder %s133, %s134
      %p145 = scmp.eq.s32.totalorder %s27, 0
      %p146 = por %p144, %p145
      %p147 = scmp.ne.s32.totalorder %s133, %s134
      %p148 = scmp.eq.s32.totalorder %s28, 3
      %p149 = por %p147, %p148
      %p151 = scmp.ne.s32.totalorder %s134, %s150
      %p152 = scmp.eq.s32.totalorder %s28, 0
      %p153 = por %p151, %p152
      %p154 = scmp.le.s32.totalorder 1, %s22
      %p155 = scmp.lt.s32.totalorder %s22, 5
      %p156 = pnand %p154, %p155
      %p157 = pneg %p156
      // Predicated region
      $region9: #{tpu_custom_call.1} parent=5 // pred_check
        _
      $region10: #{tpu_custom_call.1} parent=5 // pred_check_branch
        %159 = sbr.rel (%p156) target = $region12
      $region11: #{tpu_custom_call.1} parent=5 // pred_region
        %s160 = ssub.s32 %s22, 1
      $region12: #{tpu_custom_call.1} parent=5 // pred_fallthru
        _
      %p161 = scmp.lt.s32.totalorder %s22, 4
      // Predicated region
      $region13: #{tpu_custom_call.1} parent=5 // pred_check
        %p162 = pneg %p161
      $region14: #{tpu_custom_call.1} parent=5 // pred_check_branch
        %164 = sbr.rel (%p162) target = $region16
      $region15: #{tpu_custom_call.1} parent=5 // pred_region
        // Predicated region
        $region17: #{tpu_custom_call.1} parent=15 // pred_check
          %p165 = pneg %p56
        $region18: #{tpu_custom_call.1} parent=15 // pred_check_branch
          %167 = sbr.rel (%p165) target = $region20
        $region19: #{tpu_custom_call.1} parent=15 // pred_region
          %s168 = sand.u32 %s46, 1
          %s169 = scalar_lea.sflag [#allocation5], %s168
          %s170 = sand.u32 %s46, 1
          %s171 = smul.addr %s170, 4
          %s172 = scalar_lea.vmem [#allocation4], %s171
          %s174 = ssub.s32 64, 64
          %175 = vsyncadd %s169, %s174
          %s176 = smul.addr %s29, 2
          %s177 = sadd.s32 %s30, %s176
          %s178 = smul.addr %s177, 64
          %s179 = scalar_lea.hbm %s1, %s178
          %s181 = sshll.u32 %s172, 4
          %s182 = int_to_ptr.vmem [resolvable:$true] %s181
          %184 = dma.hbm_to_vmem [thread:$0]  %s179, 64, %s182, %s169
        $region20: #{tpu_custom_call.1} parent=15 // pred_fallthru
          _
        // Predicated region
        $region21: #{tpu_custom_call.1} parent=15 // pred_check
          %p185 = pneg %p84
        $region22: #{tpu_custom_call.1} parent=15 // pred_check_branch
          %187 = sbr.rel (%p185) target = $region24
        $region23: #{tpu_custom_call.1} parent=15 // pred_region
          %p188 = scmp.lt.s32.totalorder %s29, 1
          %s189 = scalar_select %p188, %s29, 1
          %p190 = scmp.lt.s32.totalorder %s30, 1
          %s191 = scalar_select %p190, %s30, 1
          %s192 = smul.addr %s189, 2
          %s193 = sadd.s32 %s191, %s192
          %s194 = scalar_lea.vmem %s2, %s193
        $region24: #{tpu_custom_call.1} parent=15 // pred_fallthru
          _
        // Predicated region
        $region25: #{tpu_custom_call.1} parent=15 // pred_check
          %p195 = pneg %p112
        $region26: #{tpu_custom_call.1} parent=15 // pred_check_branch
          %197 = sbr.rel (%p195) target = $region28
        $region27: #{tpu_custom_call.1} parent=15 // pred_region
          %p198 = scmp.lt.s32.totalorder %s29, 1
          %s199 = scalar_select %p198, %s29, 1
          %p200 = scmp.lt.s32.totalorder %s30, 1
          %s201 = scalar_select %p200, %s30, 1
          %s202 = smul.addr %s199, 2
          %s203 = sadd.s32 %s201, %s202
          %s204 = scalar_lea.vmem %s3, %s203
        $region28: #{tpu_custom_call.1} parent=15 // pred_fallthru
          _
      $region16: #{tpu_custom_call.1} parent=5 // pred_fallthru
        _
      %p205 = scmp.le.s32.totalorder 1, %s22
      %p206 = scmp.lt.s32.totalorder %s22, 5
      %p207 = pnand %p205, %p206
      %p208 = pneg %p207
      // Predicated region
      $region29: #{tpu_custom_call.1} parent=5 // pred_check
        _
      $region30: #{tpu_custom_call.1} parent=5 // pred_check_branch
        %210 = sbr.rel (%p207) target = $region32
      $region31: #{tpu_custom_call.1} parent=5 // pred_region
        %s211 = ssub.s32 %s22, 1
        %s212 = sand.u32 %s49, 1
        %s213 = scalar_lea.sflag [#allocation5], %s212
        %s214 = sand.u32 %s49, 1
        %s215 = smul.addr %s214, 4
        %s216 = scalar_lea.vmem [#allocation4], %s215
        // Predicated region
        $region33: #{tpu_custom_call.1} parent=31 // pred_check
          %p217 = pneg %p62
        $region34: #{tpu_custom_call.1} parent=31 // pred_check_branch
          %219 = sbr.rel (%p217) target = $region36
        $region35: #{tpu_custom_call.1} parent=31 // pred_region
          %220 = dma.done %s213, 64
        $region36: #{tpu_custom_call.1} parent=31 // pred_fallthru
          _
        %s221 = sand.u32 %s49, 1
        %s222 = scalar_lea.sflag [#allocation5], %s221
        %s223 = sand.u32 %s49, 1
        %s224 = smul.addr %s223, 4
        %s225 = scalar_lea.vmem [#allocation4], %s224
        %p226 = pneg %p62
        %p227 = pneg %p59
        %p228 = scmp.lt.s32.totalorder %s31, 1
        %s229 = scalar_select %p228, %s31, 1
        %p230 = scmp.lt.s32.totalorder %s32, 1
        %s231 = scalar_select %p230, %s32, 1
        %s232 = smul.addr %s229, 2
        %s233 = sadd.s32 %s231, %s232
        %s234 = scalar_lea.vmem %s2, %s233
        %p235 = pneg %p90
        %p236 = pneg %p87
        %p237 = scmp.lt.s32.totalorder %s31, 1
        %s238 = scalar_select %p237, %s31, 1
        %p239 = scmp.lt.s32.totalorder %s32, 1
        %s240 = scalar_select %p239, %s32, 1
        %s241 = smul.addr %s238, 2
        %s242 = sadd.s32 %s240, %s241
        %s243 = scalar_lea.vmem %s3, %s242
        %p244 = pneg %p118
        %p245 = pneg %p115
        %p246 = pneg %p146
        %p247 = pneg %p143
        %s248 = sand.u32 %s133, 1
        %s249 = scalar_lea.sflag [#allocation6], %s248
        %s250 = sand.u32 %s133, 1
        %s251 = smul.addr %s250, 8
        %s252 = scalar_lea.vmem [#allocation7], %s251
        %p253 = scmp.lt.s32.totalorder %s31, 1
        %s254 = scalar_select %p253, %s31, 1
        %p255 = scmp.lt.s32.totalorder %s32, 1
        %s256 = scalar_select %p255, %s32, 1
        %s257 = smul.addr %s254, 2
        %s258 = sadd.s32 %s256, %s257
        %s259 = scalar_lea.vmem %s2, %s258
        %p260 = scmp.lt.s32.totalorder %s31, 1
        %s261 = scalar_select %p260, %s31, 1
        %p262 = scmp.lt.s32.totalorder %s32, 1
        %s263 = scalar_select %p262, %s32, 1
        %s264 = smul.addr %s261, 2
        %s265 = sadd.s32 %s263, %s264
        %s266 = scalar_lea.vmem %s3, %s265
        %s267 = smul.u32 %s31, 2
        %s268 = sadd.s32 %s267, %s32
        %s269 = sld [smem:[#allocation3 + %s268]]
        %p270 = scmp.eq.s32.totalorder %s269, 0
        // Predicated region
        $region37: #{tpu_custom_call.1} parent=31 // pred_check
          %p271 = pneg %p270
        $region38: #{tpu_custom_call.1} parent=31 // pred_check_branch
          %273 = sbr.rel (%p271) target = $region40
        $region39: #{tpu_custom_call.1} parent=31 // pred_region
          %274 = vst [vmem:[%s252] sm:$0xff] 0.0
        $region40: #{tpu_custom_call.1} parent=31 // pred_fallthru
          _
        %p275 = scmp.ne.s32.totalorder %s269, 0
        // Predicated region
        $region41: #{tpu_custom_call.1} parent=31 // pred_check
          %p276 = pneg %p275
        $region42: #{tpu_custom_call.1} parent=31 // pred_check_branch
          %278 = sbr.rel (%p276) target = $region44
        $region43: #{tpu_custom_call.1} parent=31 // pred_region
          %v279 = vld [vmem:[%s216] sm:$0xf]
          %v280 = vld [vmem:[%s259] sm:$0x1]
          %v281 = vunpack.c.l.bf16 %v280
          %v282 = vld [vmem:[%s266] sm:$0x1]
          %v283 = vunpack.c.l.bf16 %v282
          %v284 = vmax.f32 %v279, 0.0
          %v285 = vlaneseq
          %v286 = vshrl.u32 %v285, 7
          %v287 = vsub.s32 0, %v286
          %v288 = vrot.slane %v281, %v287
          %v289 = vmul.f32 %v279, %v288
          %v290 = vsub.f32 %v284, %v289
          %v291 = vand.u32 2147483647, %v279
          %v292 = vsub.f32 0.0, %v291
          %v293 = vmul.f32 %v292, 1.442695
          %v294 = vpow.pop %v293
          %v295 = vadd.f32 %v294, 1.0
          %v296 = vlog2.pop %v295
          %v297 = vmul.f32 %v296, 0.6931472
          %v298 = vmul.f32 -0.5, %v294
          %v299 = vadd.f32 %v298, 1.0
          %v300 = vmul.f32 %v299, %v294
          %v301 = vand.u32 2147483647, %v294
          %vm302 = vcmp.lt.f32.partialorder %v301, 0.0004427343
          %v303 = vsel %vm302, %v300, %v297
          %v304 = vadd.f32 %v290, %v303
          %vm305 = vcmask 1043456
          %v306 = vsel %vm305, %v304, 0.0
          %v307 = vrot.slane %v306, 4
          %v308 = vadd.f32 %v306, %v307
          %v309 = vrot.slane %v308, 2
          %v310 = vadd.f32 %v308, %v309
          %v311 = vrot.slane %v310, 1
          %v312 = vadd.f32 %v310, %v311
          %v313 = vmul.f32 %v312, %v283
          %vm314 = vcmask 1040384
          %v315 = vsel %vm314, %v313, 0.0
          %316 = vadd.xlane.f32.xlu0 %v315
          %v317 = vpop.xlane.xlu0 %316
          %v318 = vrot.slane %v317, 4
          %v319 = vadd.f32 %v317, %v318
          %v320 = vrot.slane %v319, 2
          %v321 = vadd.f32 %v319, %v320
          %v322 = vrot.slane %v321, 1
          %v323 = vadd.f32 %v321, %v322
          %s324 = vtos %v323
          %v325 = vstv %s324
          %326 = vst [vmem:[%s252] sm:$0xff] %v325
        $region44: #{tpu_custom_call.1} parent=31 // pred_fallthru
          _
        %s327 = sand.u32 %s133, 1
        %s328 = scalar_lea.sflag [#allocation6], %s327
        %s329 = sand.u32 %s133, 1
        %s330 = smul.addr %s329, 8
        %s331 = scalar_lea.vmem [#allocation7], %s330
        // Predicated region
        $region45: #{tpu_custom_call.1} parent=31 // pred_check
          %p332 = pneg %p143
        $region46: #{tpu_custom_call.1} parent=31 // pred_check_branch
          %334 = sbr.rel (%p332) target = $region48
        $region47: #{tpu_custom_call.1} parent=31 // pred_region
          %s336 = ssub.s32 128, 128
          %337 = vsyncadd %s328, %s336
          %s338 = smul.addr %s31, 2
          %s339 = sadd.s32 %s32, %s338
          %s340 = smul.addr %s339, 128
          %s341 = scalar_lea.hbm %s4, %s340
          %s343 = sshll.u32 %s331, 4
          %s344 = int_to_ptr.vmem [resolvable:$true] %s343
          %346 = dma.vmem_to_hbm [thread:$0]  %s344, 128, %s341, %s328
        $region48: #{tpu_custom_call.1} parent=31 // pred_fallthru
          _
      $region32: #{tpu_custom_call.1} parent=5 // pred_fallthru
        _
      %p347 = scmp.le.s32.totalorder 2, %s22
      // Predicated region
      $region49: #{tpu_custom_call.1} parent=5 // pred_check
        %p348 = pneg %p347
      $region50: #{tpu_custom_call.1} parent=5 // pred_check_branch
        %350 = sbr.rel (%p348) target = $region52
      $region51: #{tpu_custom_call.1} parent=5 // pred_region
        %s351 = ssub.s32 %s22, 2
        // Predicated region
        $region53: #{tpu_custom_call.1} parent=51 // pred_check
          %p352 = pneg %p149
        $region54: #{tpu_custom_call.1} parent=51 // pred_check_branch
          %354 = sbr.rel (%p352) target = $region56
        $region55: #{tpu_custom_call.1} parent=51 // pred_region
          %s355 = sand.u32 %s134, 1
          %s356 = scalar_lea.sflag [#allocation6], %s355
          %s357 = sand.u32 %s134, 1
          %s358 = smul.addr %s357, 8
          %s359 = scalar_lea.vmem [#allocation7], %s358
          %360 = dma.done %s356, 128
        $region56: #{tpu_custom_call.1} parent=51 // pred_fallthru
          _
      $region52: #{tpu_custom_call.1} parent=5 // pred_fallthru
        _
    $region6: #{tpu_custom_call.1} parent=1 // loop_footer
      %s26 = sadd.s32 1, %s22
    $region7: #{tpu_custom_call.1} parent=1 // loop_footer_branch
      %21 = sbr.rel target = $region3
    $region8: #{tpu_custom_call.1} parent=1 // loop_exit
      _
    %361 = vsyncpa [#allocation5], 1
    %s362 = scalar_lea.sflag [#allocation5], 1
    %363 = vsyncpa %s362, 1
    %364 = vsyncpa [#allocation6], 1
    %s365 = scalar_lea.sflag [#allocation6], 1
    %366 = vsyncpa %s365, 1

</llo_original>
